<compile_context>
chip_gen: v5e
topology: v5e:2x2
jax: 0.10.0
libtpu: 0.0.40
codegen_flags: <defaults>
</compile_context>

<pallas_src>
import jax
import jax.numpy as jnp
from jax.experimental import pallas as pl
from jax.experimental.pallas import tpu as pltpu


def _encoder_kernel(xab_ref, w_ref, o_ref):
    # xab_ref : (1, K, TT)  fused polyphase input tile, time on lane axis
    # w_ref   : (N, K)      conv taps
    # o_ref   : (1, N, TT)  output tile, already in [B, N, T] layout
    acc = jnp.dot(w_ref[...], xab_ref[0], preferred_element_type=jnp.float32)
    o_ref[0] = jnp.maximum(acc, 0.0).astype(o_ref.dtype)


def _pick_time_tile(T_out, N, K, itemsize, max_tile):
    """Largest lane tile s.t. double-buffered in+out VMEM stays under budget."""
    budget = 20 << 20                                   # ~20 MiB for in+out double buffers
    per_col = 2 * (N + K) * itemsize                    # bytes per output column (x2 buffers)
    cap = max(128, (budget // per_col) // 128 * 128)
    cap = min(cap, max_tile)
    if T_out <= cap:
        return T_out                                    # single full block (no 128 constraint)
    return cap


def encoder_forward(x, weight, kernel_size, *, max_tile=4096, out_dtype=None):
    """Equivalent of Encoder.forward for in_channels == 1.

    x      : [B, L]    float32
    weight : [N, 1, K] (PyTorch Conv1d OIW layout), no bias
    returns [B, N, T_out] with T_out = (L - K) // (K // 2) + 1
    """
    K = kernel_size
    # TODO(synk): odd kernel_size (stride=(K-1)//2) would need a third shifted tap group.
    assert K % 2 == 0, "kernel_size must be even so that stride == K // 2"
    assert max_tile % 128 == 0
    stride = K // 2
    B, L = x.shape
    N = weight.shape[0]
    T_out = (L - K) // stride + 1
    out_dtype = x.dtype if out_dtype is None else out_dtype

    w2d = weight[:, 0, :].astype(x.dtype)               # [N, K]

    TT = _pick_time_tile(T_out, N, K, x.dtype.itemsize, max_tile)
    n_t = pl.cdiv(T_out, TT)
    T_pad = n_t * TT

    # ---- glue: one fused slice/pad/reshape/transpose/concat over the (small) input ----
    need = (T_pad + 1) * stride                          # samples touched incl. padding
    x_sl = x[:, :min(L, need)]
    if need > x_sl.shape[1]:
        x_sl = jnp.pad(x_sl, ((0, 0), (0, need - x_sl.shape[1])))
    xp = jnp.transpose(x_sl.reshape(B, T_pad + 1, stride), (0, 2, 1))   # [B, stride, T_pad+1]
    xab = jnp.concatenate([xp[:, :, :T_pad], xp[:, :, 1:]], axis=1)     # [B, K, T_pad]

    cost = pl.CostEstimate(
        flops=2 * B * T_out * N * K,
        bytes_accessed=(B * K * T_pad + N * K) * x.dtype.itemsize
        + B * N * T_out * jnp.dtype(out_dtype).itemsize,
        transcendentals=0,
    )

    out = pl.pallas_call(
        _encoder_kernel,
        out_shape=jax.ShapeDtypeStruct((B, N, T_out), out_dtype),
        grid=(n_t, B),                                   # time tiles lead -> megacore split
        in_specs=[
            pl.BlockSpec((1, K, TT), lambda t, b: (b, 0, t)),
            pl.BlockSpec((N, K), lambda t, b: (0, 0)),
        ],
        out_specs=pl.BlockSpec((1, N, TT), lambda t, b: (b, 0, t)),
        compiler_params=pltpu.CompilerParams(
            dimension_semantics=("parallel", "parallel"),
            vmem_limit_bytes=48 << 20,
        ),
        cost_estimate=cost,
    )(xab, w2d)
    return out


def reference_forward(x, weight, kernel_size):
    """Pure-JAX reference (lax conv) for sanity checking."""
    stride = kernel_size // 2
    y = jax.lax.conv_general_dilated(
        x[:, None, :],            # [B, 1, L]  (NCW)
        weight,                   # [N, 1, K]  (OIW)
        window_strides=(stride,),
        padding="VALID",
        dimension_numbers=("NCW", "OIW", "NCW"),
    )
    return jnp.maximum(y, 0.0)


if __name__ == "__main__":
    key = jax.random.PRNGKey(0)
    kx, kw = jax.random.split(key)

    B, L = 2, 128
    kernel_size, out_channels, in_channels = 4, 64, 1

    x = jax.random.normal(kx, (B, L), dtype=jnp.float32)
    # deterministic synthetic Conv1d weight, shape [out_ch, in_ch, K]
    fan_in = in_channels * kernel_size
    bound = 1.0 / (fan_in ** 0.5)
    weight = jax.random.uniform(
        kw, (out_channels, in_channels, kernel_size),
        minval=-bound, maxval=bound, dtype=jnp.float32)

    # exact-block path (single time tile per batch)
    out = jax.block_until_ready(encoder_forward(x, weight, kernel_size))
    ref = reference_forward(x, weight, kernel_size)
    assert out.shape == ref.shape, (out.shape, ref.shape)
    assert jnp.allclose(out, ref, atol=1e-5, rtol=1e-5), float(jnp.max(jnp.abs(out - ref)))

    # tiled path (multiple time tiles + partial last output block)
    x2 = jax.random.normal(jax.random.PRNGKey(1), (B, 600), dtype=jnp.float32)
    out2 = jax.block_until_ready(encoder_forward(x2, weight, kernel_size, max_tile=128))
    ref2 = reference_forward(x2, weight, kernel_size)
    assert out2.shape == ref2.shape, (out2.shape, ref2.shape)
    assert jnp.allclose(out2, ref2, atol=1e-5, rtol=1e-5), float(jnp.max(jnp.abs(out2 - ref2)))

    # optional bf16-output path (writeback-bandwidth saving), looser tolerance
    out3 = jax.block_until_ready(
        encoder_forward(x, weight, kernel_size, out_dtype=jnp.bfloat16))
    assert out3.shape == ref.shape
    assert jnp.allclose(out3.astype(jnp.float32), ref, atol=3e-2, rtol=3e-2)

    print("KERNEL_OK")
</pallas_src>

<mosaic_0001>
module attributes {stable_mosaic.version = 11 : i64} {
  func.func @_encoder_kernel(%arg0: i32, %arg1: i32, %arg2: memref<1x4x63xf32, #tpu.memory_space<vmem>>, %arg3: memref<64x4xf32, #tpu.memory_space<vmem>>, %arg4: memref<1x64x63xf32, #tpu.memory_space<vmem>>) attributes {dimension_semantics = [#tpu.dimension_semantics<parallel>, #tpu.dimension_semantics<parallel>], iteration_bounds = array<i64: 1, 2>, scalar_prefetch = 0 : i64, scratch_operands = 0 : i64, tpu.core_type = #tpu.core_type<tc>, window_params = [{transform_indices = @transform_0, window_bounds = array<i64: 1, 4, 63>}, {pipeline_mode = #tpu.pipeline_mode<synchronous>, transform_indices = @transform_1, window_bounds = array<i64: 64, 4>}, {transform_indices = @transform_2, window_bounds = array<i64: 1, 64, 63>}]} {
    %c0 = arith.constant 0 : index
    %c0_0 = arith.constant 0 : index
    %0 = vector.load %arg3[%c0, %c0_0] : memref<64x4xf32, #tpu.memory_space<vmem>>, vector<64x4xf32>
    %c0_1 = arith.constant 0 : index
    %c0_2 = arith.constant 0 : index
    %c0_3 = arith.constant 0 : index
    %1 = vector.load %arg2[%c0_1, %c0_2, %c0_3] : memref<1x4x63xf32, #tpu.memory_space<vmem>>, vector<1x4x63xf32>
    %2 = vector.shape_cast %1 : vector<1x4x63xf32> to vector<4x63xf32>
    %cst = arith.constant dense<0.000000e+00> : vector<64x63xf32>
    %3 = tpu.matmul %0, %2, %cst {dimension_numbers = #tpu.dot_dimension_numbers<[1], [0], [0], [1], [0, 0, 1, 1], [], []>} : vector<64x4xf32>, vector<4x63xf32>, vector<64x63xf32> -> vector<64x63xf32>
    %cst_4 = arith.constant 0.000000e+00 : f32
    %4 = vector.broadcast %cst_4 : f32 to vector<64x63xf32>
    %5 = arith.maximumf %3, %4 : vector<64x63xf32>
    %c0_5 = arith.constant 0 : index
    %c0_6 = arith.constant 0 : index
    %c0_7 = arith.constant 0 : index
    %6 = vector.load %arg4[%c0_5, %c0_6, %c0_7] : memref<1x64x63xf32, #tpu.memory_space<vmem>>, vector<1x64x63xf32>
    %7 = vector.shape_cast %6 : vector<1x64x63xf32> to vector<64x63xf32>
    %8 = vector.shape_cast %5 : vector<64x63xf32> to vector<1x64x63xf32>
    tpu.vector_store %arg4[%c0_5, %c0_6, %c0_7], %8 {strides = array<i32>} : memref<1x64x63xf32, #tpu.memory_space<vmem>>, vector<1x64x63xf32>,
    return
  }
  func.func @transform_0(%arg0: i32, %arg1: i32) -> (i32, i32, i32) {
    %c0_i32 = arith.constant 0 : i32
    %c0_i32_0 = arith.constant 0 : i32
    return %arg1, %c0_i32, %arg0 : i32, i32, i32
  }
  func.func @transform_1(%arg0: i32, %arg1: i32) -> (i32, i32) {
    %c0_i32 = arith.constant 0 : i32
    %c0_i32_0 = arith.constant 0 : i32
    %c0_i32_1 = arith.constant 0 : i32
    return %c0_i32, %c0_i32_0 : i32, i32
  }
  func.func @transform_2(%arg0: i32, %arg1: i32) -> (i32, i32, i32) {
    %c0_i32 = arith.constant 0 : i32
    %c0_i32_0 = arith.constant 0 : i32
    return %arg1, %c0_i32, %arg0 : i32, i32, i32
  }
}

</mosaic_0001>

<llo_original>
// kernel: tpu_custom_call.1
$region0: #{tpu_custom_call.1}
  #allocation0 [shape = 'u32[]', space=smem, size = 0x4, offset = 0x4, fixed_abs, tag = 'smem constant byte address 0x4 - core index']
  #allocation1 [shape = 'u32[72,128]{1,0:T(1,128)}', space=vmem, size = 0x9000, scoped, tag = 'internal scratch']
  %s0 = inlined_call_operand.vmem [shape: f32[2,4,63], index: 0, kind: input, shape index: {}]
  %s1 = inlined_call_operand.vmem [shape: f32[64,4], index: 1, kind: input, shape index: {}]
  %s2 = inlined_call_operand.vmem [shape: f32[2,64,63], index: 2, kind: output, shape index: {}]
  %s3 = sld [smem:[#allocation0]]
  $region41: #{tpu_custom_call.1} parent=0
    _
  %s5 = ssub.s32 1, %s3
  %s6 = scalar_select 0, %s5, %s3
  loop: start=0, step=1, limit=4
  $region2: #{tpu_custom_call.1} parent=0 // loop_pre_header
    _
  $region3: #{tpu_custom_call.1} parent=0 // loop_header
    %s8 = sphi 0, %s12
    %p9 = scmp.ge.s32.totalorder %s8, 4
    %s15 = sphi 0, %s27
    %s16 = sphi 0, %s23
    %s17 = sphi 0, %s15
    %s18 = sphi 0, %s16
    %s19 = sphi 0, %s17
    %s20 = sphi 0, %s18
    %s32 = sphi 0, %s34
    %s35 = sphi 0, %s32
    %s36 = sphi 0, %s35
    %s52 = sphi 0, %s36
    %s56 = sphi 0, %s56
    %s58 = sphi 0, %s56
    %s59 = sphi 0, %s58
    %s73 = sphi 0, %s59
    %s81 = sphi 0, %s83
    %s84 = sphi 0, %s81
    %s85 = sphi 0, %s84
    %s101 = sphi 0, %s85
  $region4: #{tpu_custom_call.1} parent=0 // loop_header_branch
    %11 = sbr.rel (%p9) target = $region8
  $region5: #{tpu_custom_call.1} parent=0 // loop_body
    %s13 = ssub.s32 %s8, 1
    %s14 = ssub.s32 %s8, 2
    %s21 = sadd.s32 1, %s16
    %p22 = scmp.ge.s32.totalorder %s21, 2
    %s23 = scalar_select %p22, 0, %s21
    %s24 = sadd.s32 1, %s15
    %s25 = scalar_select %p22, %s24, %s15
    %p26 = scmp.ge.s32.totalorder %s25, 1
    %s27 = scalar_select %p26, 0, %s25
    %s28 = ssub.s32 %s16, %s23
    %s29 = ssub.s32 %s15, %s27
    %s30 = sor.u32 %s28, %s29
    %p31 = scmp.eq.s32.totalorder %s30, 0
    %s33 = sadd.s32 %s32, 1
    %s34 = scalar_select %p31, %s32, %s33
    %p37 = pneg %p31
    %p38 = scmp.eq.s32.totalorder %s8, 1
    %p39 = por %p37, %p38
    %p40 = scmp.ne.s32.totalorder %s32, %s35
    %p41 = scmp.eq.s32.totalorder %s8, 0
    %p42 = por %p40, %p41
    %p43 = scmp.ne.s32.totalorder %s32, %s35
    %p44 = scmp.eq.s32.totalorder %s13, 1
    %p45 = por %p43, %p44
    %p46 = scmp.ne.s32.totalorder %s35, %s36
    %p47 = scmp.eq.s32.totalorder %s13, 0
    %p48 = por %p46, %p47
    %p49 = scmp.ne.s32.totalorder %s35, %s36
    %p50 = scmp.eq.s32.totalorder %s14, 1
    %p51 = por %p49, %p50
    %p53 = scmp.ne.s32.totalorder %s36, %s52
    %p54 = scmp.eq.s32.totalorder %s14, 0
    %p55 = por %p53, %p54
    %s57 = sadd.s32 %s56, 1
    %p60 = scmp.eq.s32.totalorder %s8, 1
    %p61 = scmp.ne.s32.totalorder %s56, %s58
    %p62 = scmp.eq.s32.totalorder %s8, 0
    %p63 = por %p61, %p62
    %p64 = scmp.ne.s32.totalorder %s56, %s58
    %p65 = scmp.eq.s32.totalorder %s13, 1
    %p66 = por %p64, %p65
    %p67 = scmp.ne.s32.totalorder %s58, %s59
    %p68 = scmp.eq.s32.totalorder %s13, 0
    %p69 = por %p67, %p68
    %p70 = scmp.ne.s32.totalorder %s58, %s59
    %p71 = scmp.eq.s32.totalorder %s14, 1
    %p72 = por %p70, %p71
    %p74 = scmp.ne.s32.totalorder %s59, %s73
    %p75 = scmp.eq.s32.totalorder %s14, 0
    %p76 = por %p74, %p75
    %s77 = ssub.s32 %s16, %s23
    %s78 = ssub.s32 %s15, %s27
    %s79 = sor.u32 %s77, %s78
    %p80 = scmp.eq.s32.totalorder %s79, 0
    %s82 = sadd.s32 %s81, 1
    %s83 = scalar_select %p80, %s81, %s82
    %p86 = pneg %p80
    %p87 = scmp.eq.s32.totalorder %s8, 1
    %p88 = por %p86, %p87
    %p89 = scmp.ne.s32.totalorder %s81, %s84
    %p90 = scmp.eq.s32.totalorder %s8, 0
    %p91 = por %p89, %p90
    %p92 = scmp.ne.s32.totalorder %s81, %s84
    %p93 = scmp.eq.s32.totalorder %s13, 1
    %p94 = por %p92, %p93
    %p95 = scmp.ne.s32.totalorder %s84, %s85
    %p96 = scmp.eq.s32.totalorder %s13, 0
    %p97 = por %p95, %p96
    %p98 = scmp.ne.s32.totalorder %s84, %s85
    %p99 = scmp.eq.s32.totalorder %s14, 1
    %p100 = por %p98, %p99
    %p102 = scmp.ne.s32.totalorder %s85, %s101
    %p103 = scmp.eq.s32.totalorder %s14, 0
    %p104 = por %p102, %p103
    %p105 = scmp.le.s32.totalorder 1, %s8
    %p106 = scmp.lt.s32.totalorder %s8, 3
    %p107 = pnand %p105, %p106
    %p108 = pneg %p107
    // Predicated region
    $region9: #{tpu_custom_call.1} parent=5 // pred_check
      _
    $region10: #{tpu_custom_call.1} parent=5 // pred_check_branch
      %110 = sbr.rel (%p107) target = $region12
    $region11: #{tpu_custom_call.1} parent=5 // pred_region
      %s111 = ssub.s32 %s8, 1
      // Predicated region
      $region13: #{tpu_custom_call.1} parent=11 // pred_check
        %p112 = pneg %p69
      $region14: #{tpu_custom_call.1} parent=11 // pred_check_branch
        %114 = sbr.rel (%p112) target = $region16
      $region15: #{tpu_custom_call.1} parent=11 // pred_region
        _
      $region16: #{tpu_custom_call.1} parent=11 // pred_fallthru
        _
    $region12: #{tpu_custom_call.1} parent=5 // pred_fallthru
      _
    %p115 = scmp.lt.s32.totalorder %s8, 2
    // Predicated region
    $region17: #{tpu_custom_call.1} parent=5 // pred_check
      %p116 = pneg %p115
    $region18: #{tpu_custom_call.1} parent=5 // pred_check_branch
      %118 = sbr.rel (%p116) target = $region20
    $region19: #{tpu_custom_call.1} parent=5 // pred_region
      // Predicated region
      $region21: #{tpu_custom_call.1} parent=19 // pred_check
        %p119 = pneg %p42
      $region22: #{tpu_custom_call.1} parent=19 // pred_check_branch
        %121 = sbr.rel (%p119) target = $region24
      $region23: #{tpu_custom_call.1} parent=19 // pred_region
        %p122 = scmp.lt.s32.totalorder %s16, 1
        %s123 = scalar_select %p122, %s16, 1
        %p124 = scmp.lt.s32.totalorder %s15, 0
        %s125 = scalar_select %p124, %s15, 0
        %s126 = sadd.s32 %s125, %s123
        %s127 = smul.addr %s126, 4
        %s128 = scalar_lea.vmem %s0, %s127
      $region24: #{tpu_custom_call.1} parent=19 // pred_fallthru
        _
    $region20: #{tpu_custom_call.1} parent=5 // pred_fallthru
      _
    %p129 = scmp.le.s32.totalorder 1, %s8
    %p130 = scmp.lt.s32.totalorder %s8, 3
    %p131 = pnand %p129, %p130
    %p132 = pneg %p131
    // Predicated region
    $region25: #{tpu_custom_call.1} parent=5 // pred_check
      _
    $region26: #{tpu_custom_call.1} parent=5 // pred_check_branch
      %134 = sbr.rel (%p131) target = $region28
    $region27: #{tpu_custom_call.1} parent=5 // pred_region
      %s135 = ssub.s32 %s8, 1
      %p136 = scmp.lt.s32.totalorder %s18, 1
      %s137 = scalar_select %p136, %s18, 1
      %p138 = scmp.lt.s32.totalorder %s17, 0
      %s139 = scalar_select %p138, %s17, 0
      %s140 = sadd.s32 %s139, %s137
      %s141 = smul.addr %s140, 4
      %s142 = scalar_lea.vmem %s0, %s141
      %p143 = pneg %p48
      %p144 = pneg %p45
      %p145 = pneg %p69
      %p146 = pneg %p66
      %p147 = pneg %p97
      %p148 = pneg %p94
      %p149 = scmp.lt.s32.totalorder %s18, 1
      %s150 = scalar_select %p149, %s18, 1
      %p151 = scmp.lt.s32.totalorder %s17, 0
      %s152 = scalar_select %p151, %s17, 0
      %s153 = smul.addr %s150, 8
      %s154 = sadd.s32 %s152, %s153
      %s155 = smul.addr %s154, 8
      %s156 = scalar_lea.vmem %s2, %s155
      %p157 = scmp.lt.s32.totalorder %s18, 1
      %s158 = scalar_select %p157, %s18, 1
      %p159 = scmp.lt.s32.totalorder %s17, 0
      %s160 = scalar_select %p159, %s17, 0
      %s161 = sadd.s32 %s160, %s158
      %s162 = smul.addr %s161, 4
      %s163 = scalar_lea.vmem %s0, %s162
      %p164 = scmp.lt.s32.totalorder %s18, 1
      %s165 = scalar_select %p164, %s18, 1
      %p166 = scmp.lt.s32.totalorder %s17, 0
      %s167 = scalar_select %p166, %s17, 0
      %s168 = smul.addr %s165, 8
      %s169 = sadd.s32 %s167, %s168
      %s170 = smul.addr %s169, 8
      %s171 = scalar_lea.vmem %s2, %s170
      %v172 = vld [vmem:[%s1] sm:$0xff]
      %v173 = vld [vmem:[%s1 + $0x8] sm:$0xff]
      %v174 = vld [vmem:[%s1 + $0x10] sm:$0xff]
      %v175 = vld [vmem:[%s1 + $0x18] sm:$0xff]
      %v176 = vld [vmem:[%s1 + $0x20] sm:$0xff]
      %v177 = vld [vmem:[%s1 + $0x28] sm:$0xff]
      %v178 = vld [vmem:[%s1 + $0x30] sm:$0xff]
      %v179 = vld [vmem:[%s1 + $0x38] sm:$0xff]
      %v180 = vld [vmem:[%s163] sm:$0xf]
      %vm181 = vcmask 31744
      %v183 = vsel %vm181, %v172, 0
      %v186 = vsel %vm181, %v173, 0
      %v189 = vsel %vm181, %v174, 0
      %v192 = vsel %vm181, %v175, 0
      %v195 = vsel %vm181, %v176, 0
      %v198 = vsel %vm181, %v177, 0
      %v201 = vsel %vm181, %v178, 0
      %v204 = vsel %vm181, %v179, 0
      %vm206 = vcmask 1043456
      %v208 = vsel %vm206, %v180, 0
      %210 = vmatpush.msra.mxu0 0.0
      %211 = vmatpush.msra.mxu0 0.0
      %212 = vmatpush.msra.mxu0 0.0
      %213 = vmatpush.msra.mxu0 0.0
      %214 = vmatpush.msra.mxu0 0.0
      %215 = vmatpush.msra.mxu0 0.0
      %216 = vmatpush.msra.mxu0 0.0
      %217 = vmatpush.msra.mxu0 0.0
      %218 = vmatpush.msra.mxu0 0.0
      %219 = vmatpush.msra.mxu0 0.0
      %220 = vmatpush.msra.mxu0 0.0
      %221 = vmatpush.msra.mxu0 0.0
      %222 = vmatpush.msra.mxu0 0.0
      %223 = vmatpush.msra.mxu0 0.0
      %224 = vmatpush.msra.mxu0 0.0
      %225 = vmatpush.msra.mxu0 %v208
      %226 = vmatmul.f32.gmra.mxu0 %v183
      %v227 = vpop.f32.mrf.mxu0
      %v228 = vadd.f32 0.0, %v227
      %229 = vmatmul.f32.gmra.mxu0 %v186
      %v230 = vpop.f32.mrf.mxu0
      %v231 = vadd.f32 0.0, %v230
      %232 = vmatmul.f32.gmra.mxu0 %v189
      %v233 = vpop.f32.mrf.mxu0
      %v234 = vadd.f32 0.0, %v233
      %235 = vmatmul.f32.gmra.mxu0 %v192
      %v236 = vpop.f32.mrf.mxu0
      %v237 = vadd.f32 0.0, %v236
      %238 = vmatmul.f32.gmra.mxu0 %v195
      %v239 = vpop.f32.mrf.mxu0
      %v240 = vadd.f32 0.0, %v239
      %241 = vmatmul.f32.gmra.mxu0 %v198
      %v242 = vpop.f32.mrf.mxu0
      %v243 = vadd.f32 0.0, %v242
      %244 = vmatmul.f32.gmra.mxu0 %v201
      %v245 = vpop.f32.mrf.mxu0
      %v246 = vadd.f32 0.0, %v245
      %247 = vmatmul.f32.gmra.mxu0 %v204
      %v248 = vpop.f32.mrf.mxu0
      %v249 = vadd.f32 0.0, %v248
      %250 = vdwg.mxu0
      %v251 = vmax.f32 %v228, 0.0
      %v252 = vmax.f32 %v231, 0.0
      %v253 = vmax.f32 %v234, 0.0
      %v254 = vmax.f32 %v237, 0.0
      %v255 = vmax.f32 %v240, 0.0
      %v256 = vmax.f32 %v243, 0.0
      %v257 = vmax.f32 %v246, 0.0
      %v258 = vmax.f32 %v249, 0.0
      %vm259 = vcmask 515072
      %260 = vst.msk [vmem:[%s171] sm:$0xff] %vm259, %v251
      %261 = vst.msk [vmem:[%s171 + $0x8] sm:$0xff] %vm259, %v252
      %262 = vst.msk [vmem:[%s171 + $0x10] sm:$0xff] %vm259, %v253
      %263 = vst.msk [vmem:[%s171 + $0x18] sm:$0xff] %vm259, %v254
      %264 = vst.msk [vmem:[%s171 + $0x20] sm:$0xff] %vm259, %v255
      %265 = vst.msk [vmem:[%s171 + $0x28] sm:$0xff] %vm259, %v256
      %266 = vst.msk [vmem:[%s171 + $0x30] sm:$0xff] %vm259, %v257
      %267 = vst.msk [vmem:[%s171 + $0x38] sm:$0xff] %vm259, %v258
      %p268 = scmp.lt.s32.totalorder %s18, 1
      %s269 = scalar_select %p268, %s18, 1
      %p270 = scmp.lt.s32.totalorder %s17, 0
      %s271 = scalar_select %p270, %s17, 0
      %s272 = smul.addr %s269, 8
      %s273 = sadd.s32 %s271, %s272
      %s274 = smul.addr %s273, 8
      %s275 = scalar_lea.vmem %s2, %s274
      // Predicated region
      $region29: #{tpu_custom_call.1} parent=27 // pred_check
        %p276 = pneg %p94
      $region30: #{tpu_custom_call.1} parent=27 // pred_check_branch
        %278 = sbr.rel (%p276) target = $region32
      $region31: #{tpu_custom_call.1} parent=27 // pred_region
        _
      $region32: #{tpu_custom_call.1} parent=27 // pred_fallthru
        _
    $region28: #{tpu_custom_call.1} parent=5 // pred_fallthru
      _
    %p279 = scmp.le.s32.totalorder 2, %s8
    // Predicated region
    $region33: #{tpu_custom_call.1} parent=5 // pred_check
      %p280 = pneg %p279
    $region34: #{tpu_custom_call.1} parent=5 // pred_check_branch
      %282 = sbr.rel (%p280) target = $region36
    $region35: #{tpu_custom_call.1} parent=5 // pred_region
      %s283 = ssub.s32 %s8, 2
      // Predicated region
      $region37: #{tpu_custom_call.1} parent=35 // pred_check
        %p284 = pneg %p100
      $region38: #{tpu_custom_call.1} parent=35 // pred_check_branch
        %286 = sbr.rel (%p284) target = $region40
      $region39: #{tpu_custom_call.1} parent=35 // pred_region
        %p287 = scmp.lt.s32.totalorder %s20, 1
        %s288 = scalar_select %p287, %s20, 1
        %p289 = scmp.lt.s32.totalorder %s19, 0
        %s290 = scalar_select %p289, %s19, 0
        %s291 = smul.addr %s288, 8
        %s292 = sadd.s32 %s290, %s291
        %s293 = smul.addr %s292, 8
        %s294 = scalar_lea.vmem %s2, %s293
      $region40: #{tpu_custom_call.1} parent=35 // pred_fallthru
        _
    $region36: #{tpu_custom_call.1} parent=5 // pred_fallthru
      _
  $region6: #{tpu_custom_call.1} parent=0 // loop_footer
    %s12 = sadd.s32 1, %s8
  $region7: #{tpu_custom_call.1} parent=0 // loop_footer_branch
    %7 = sbr.rel target = $region3
  $region8: #{tpu_custom_call.1} parent=0 // loop_exit
    _

</llo_original>
